<compile_context>
chip_gen: v6e
topology: v6e:2x2x1
jax: 0.10.0
libtpu: 0.0.40
codegen_flags: <defaults>
</compile_context>

<pallas_src>
import functools
import math

import jax
import jax.numpy as jnp
from jax.experimental import pallas as pl
from jax.experimental.pallas import tpu as pltpu

_LANE = 512          # lane-dense last dim (multiple of 128)
_BLOCK_ROWS = 1024   # sublane tile (multiple of 8); clipped for tiny inputs


def _round_up(x, m):
    return ((x + m - 1) // m) * m


def _mse_kernel(x_ref, t_ref, loss_ref, acc_ref, *, inv_count):
    step = pl.program_id(0)

    @pl.when(step == 0)
    def _():
        acc_ref[0] = 0.0

    d = x_ref[...].astype(jnp.float32) - t_ref[...].astype(jnp.float32)
    acc_ref[0] += jnp.sum(d * d)

    @pl.when(step == pl.num_programs(0) - 1)
    def _():
        # Scale by 1/true_count exactly once, at finalize.
        loss_ref[0] = acc_ref[0] * inv_count


def content_loss_forward(x, target, *, block_rows=_BLOCK_ROWS, lane=_LANE):
    """Forward of ContentLoss: returns (input unchanged, scalar MSE loss)."""
    assert x.shape == target.shape, (x.shape, target.shape)
    total = math.prod(x.shape)

    # Flatten to a lane-dense (rows_padded, lane) slab; zero-pad the tail.
    rows = pl.cdiv(total, lane)
    block_rows = min(block_rows, _round_up(rows, 8))   # stays a multiple of 8
    rows_padded = _round_up(rows, block_rows)          # grid divides exactly
    padded_total = rows_padded * lane

    def _prep(a):
        flat = a.reshape(-1)
        if padded_total != total:
            flat = jnp.pad(flat, (0, padded_total - total))
        return flat.reshape(rows_padded, lane)

    xf = _prep(x)
    tf = _prep(target)

    grid = (rows_padded // block_rows,)
    bytes_per_elem = x.dtype.itemsize + target.dtype.itemsize

    loss = pl.pallas_call(
        functools.partial(_mse_kernel, inv_count=1.0 / float(total)),
        out_shape=jax.ShapeDtypeStruct((1,), jnp.float32),
        grid=grid,
        in_specs=[
            pl.BlockSpec((block_rows, lane), lambda i: (i, 0)),
            pl.BlockSpec((block_rows, lane), lambda i: (i, 0)),
        ],
        out_specs=pl.BlockSpec(memory_space=pltpu.MemorySpace.SMEM),
        scratch_shapes=[pltpu.SMEM((1,), jnp.float32)],
        compiler_params=pltpu.CompilerParams(
            dimension_semantics=("arbitrary",),
        ),
        cost_estimate=pl.CostEstimate(
            flops=3 * total,
            transcendentals=0,
            bytes_accessed=total * bytes_per_elem,
        ),
    )(xf, tf)

    # forward() returns the input unchanged (loss stored as a side value).
    return x, loss[0]


# ---------------------------------------------------------------------------
# Plain-JAX reference for validation
# ---------------------------------------------------------------------------
def _content_loss_ref(x, target):
    return jnp.mean((x.astype(jnp.float32) - target.astype(jnp.float32)) ** 2)


if __name__ == "__main__":
    key = jax.random.PRNGKey(0)
    k_tgt, k_in = jax.random.split(key)

    # Small shapes consistent with the module: NCHW feature maps.
    N, C, H, W = 2, 4, 16, 16
    target = jax.random.normal(k_tgt, (N, C, H, W), dtype=jnp.float32)
    x = jax.random.normal(k_in, (N, C, H, W), dtype=jnp.float32)

    out, loss = content_loss_forward(x, target)
    out = jax.block_until_ready(out)
    loss = jax.block_until_ready(loss)

    ref = _content_loss_ref(x, target)
    assert out.shape == x.shape and jnp.allclose(out, x), \
        "forward must return input unchanged"
    assert jnp.allclose(loss, ref, rtol=1e-5, atol=1e-6), (loss, ref)

    print("KERNEL_OK")
</pallas_src>

<mosaic_0001>
module attributes {stable_mosaic.version = 11 : i64} {
  func.func @_mse_kernel(%arg0: i32, %arg1: memref<8x512xf32, #tpu.memory_space<vmem>>, %arg2: memref<8x512xf32, #tpu.memory_space<vmem>>, %arg3: memref<1xf32, #tpu.memory_space<smem>>, %arg4: memref<1xf32, #tpu.memory_space<smem>>) attributes {dimension_semantics = [#tpu.dimension_semantics<arbitrary>], iteration_bounds = array<i64: 1>, scalar_prefetch = 0 : i64, scratch_operands = 1 : i64, tpu.core_type = #tpu.core_type<tc>, window_params = [{transform_indices = @transform_0, window_bounds = array<i64: 8, 512>}, {transform_indices = @transform_1, window_bounds = array<i64: 8, 512>}, {transform_indices = @transform_2, window_bounds = array<i64: 1>}]} {
    %c0_i32 = arith.constant 0 : i32
    %0 = arith.cmpi eq, %arg0, %c0_i32 : i32
    %1 = arith.extui %0 : i1 to i32
    %c0_i32_0 = arith.constant 0 : i32
    %2 = arith.cmpi ne, %1, %c0_i32_0 : i32
    scf.if %2 {
      %cst_8 = arith.constant 0.000000e+00 : f32
      %c0_9 = arith.constant 0 : index
      %17 = memref.load %arg4[%c0_9] : memref<1xf32, #tpu.memory_space<smem>>
      memref.store %cst_8, %arg4[%c0_9] : memref<1xf32, #tpu.memory_space<smem>>
    } else {
    }
    %c0 = arith.constant 0 : index
    %c0_1 = arith.constant 0 : index
    %3 = vector.load %arg1[%c0, %c0_1] : memref<8x512xf32, #tpu.memory_space<vmem>>, vector<8x512xf32>
    %c0_2 = arith.constant 0 : index
    %c0_3 = arith.constant 0 : index
    %4 = vector.load %arg2[%c0_2, %c0_3] : memref<8x512xf32, #tpu.memory_space<vmem>>, vector<8x512xf32>
    %5 = arith.subf %3, %4 : vector<8x512xf32>
    %c0_4 = arith.constant 0 : index
    %6 = memref.load %arg4[%c0_4] : memref<1xf32, #tpu.memory_space<smem>>
    %7 = arith.mulf %5, %5 : vector<8x512xf32>
    %8 = vector.shape_cast %7 : vector<8x512xf32> to vector<1x8x512xf32>
    %cst = arith.constant dense<0.000000e+00> : vector<1xf32>
    %9 = vector.multi_reduction <add>, %8, %cst [1, 2] : vector<1x8x512xf32> to vector<1xf32>
    %10 = vector.shape_cast %9 : vector<1xf32> to vector<1x1x1xf32>
    %11 = vector.extract %10[0, 0, 0] : f32 from vector<1x1x1xf32>
    %12 = arith.addf %6, %11 : f32
    %c0_5 = arith.constant 0 : index
    %13 = memref.load %arg4[%c0_5] : memref<1xf32, #tpu.memory_space<smem>>
    memref.store %12, %arg4[%c0_5] : memref<1xf32, #tpu.memory_space<smem>>
    %c0_i32_6 = arith.constant 0 : i32
    %14 = arith.cmpi eq, %arg0, %c0_i32_6 : i32
    %15 = arith.extui %14 : i1 to i32
    %c0_i32_7 = arith.constant 0 : i32
    %16 = arith.cmpi ne, %15, %c0_i32_7 : i32
    scf.if %16 {
      %c0_8 = arith.constant 0 : index
      %17 = memref.load %arg4[%c0_8] : memref<1xf32, #tpu.memory_space<smem>>
      %cst_9 = arith.constant 4.8828125E-4 : f32
      %18 = arith.mulf %17, %cst_9 : f32
      %c0_10 = arith.constant 0 : index
      %19 = memref.load %arg3[%c0_10] : memref<1xf32, #tpu.memory_space<smem>>
      memref.store %18, %arg3[%c0_10] : memref<1xf32, #tpu.memory_space<smem>>
    } else {
    }
    return
  }
  func.func @transform_0(%arg0: i32) -> (i32, i32) {
    %c0_i32 = arith.constant 0 : i32
    %c0_i32_0 = arith.constant 0 : i32
    return %arg0, %c0_i32 : i32, i32
  }
  func.func @transform_1(%arg0: i32) -> (i32, i32) {
    %c0_i32 = arith.constant 0 : i32
    %c0_i32_0 = arith.constant 0 : i32
    return %arg0, %c0_i32 : i32, i32
  }
  func.func @transform_2(%arg0: i32) -> i32 {
    %c0_i32 = arith.constant 0 : i32
    %c0_i32_0 = arith.constant 0 : i32
    return %c0_i32 : i32
  }
}

</mosaic_0001>

<llo_original>
// kernel: tpu_custom_call.1
$region0: #{tpu_custom_call.1}
  #allocation0 [shape = 'u32[]', space=smem, size = 0x4, offset = 0x4, fixed_abs, tag = 'smem constant byte address 0x4 - core index']
  #allocation1 [shape = 'u32[144,128]{1,0:T(1,128)}', space=vmem, size = 0x12000, scoped, tag = 'internal scratch']
  #allocation2 [shape = 'f32[1]{0:T(128)}', space=smem, size = 0x200, scoped, tag = 'scratch operand']
  %s0 = inlined_call_operand.hbm [shape: f32[8,512], index: 0, kind: input, shape index: {}]
  %s1 = inlined_call_operand.hbm [shape: f32[8,512], index: 1, kind: input, shape index: {}]
  %s2 = inlined_call_operand.hbm [shape: f32[1], index: 2, kind: output, shape index: {}]
  %s3 = sld [smem:[#allocation0]]
  $region34: #{tpu_custom_call.1} parent=0
    _
  %s5 = ssub.s32 1, %s3
  %s6 = scalar_select 0, %s5, %s3
  $region1: #{tpu_custom_call.1} parent=0
    #allocation3 [shape = 'u8[16384]{0}', space=vmem, size = 0x4000, scoped, tag = 'input window, operand 0, single buffered']
    #allocation4 [shape = 's32[1]{0}', space=sflag, size = 0x4, scoped, tag = 'scoped memory for tpu_custom_call.1']
    #allocation5 [shape = 's32[1]{0}', space=sflag, size = 0x4, scoped, tag = 'scoped memory for tpu_custom_call.1']
    #allocation6 [shape = 'u8[16384]{0}', space=vmem, size = 0x4000, scoped, tag = 'input window, operand 1, single buffered']
    #allocation7 [shape = 's32[1]{0}', space=sflag, size = 0x4, scoped, tag = 'scoped memory for tpu_custom_call.1']
    #allocation8 [shape = 'u8[512]{0}', space=smem, size = 0x200, scoped, tag = 'output window, operand 0, single buffered']
    %7 = vsyncpa [#allocation4], 0
    %8 = vsyncpa [#allocation7], 0
    %9 = vsyncpa [#allocation5], 0
    // Predicated region
    $region2: #{tpu_custom_call.1} parent=1 // pred_check
      _
    $region3: #{tpu_custom_call.1} parent=1 // pred_check_branch
      %11 = sbr.rel (0) target = $region5
    $region4: #{tpu_custom_call.1} parent=1 // pred_region
      %s13 = ssub.s32 512, 512
      %14 = vsyncadd [#allocation4], %s13
      %s16 = sshll.u32 [#allocation3], 4
      %s17 = int_to_ptr.vmem [resolvable:$true] %s16
      %19 = dma.hbm_to_vmem [thread:$0]  %s0, 512, %s17, [#allocation4]
    $region5: #{tpu_custom_call.1} parent=1 // pred_fallthru
      _
    // Predicated region
    $region6: #{tpu_custom_call.1} parent=1 // pred_check
      _
    $region7: #{tpu_custom_call.1} parent=1 // pred_check_branch
      %21 = sbr.rel (0) target = $region9
    $region8: #{tpu_custom_call.1} parent=1 // pred_region
      %s23 = ssub.s32 512, 512
      %24 = vsyncadd [#allocation7], %s23
      %s26 = sshll.u32 [#allocation6], 4
      %s27 = int_to_ptr.vmem [resolvable:$true] %s26
      %29 = dma.hbm_to_vmem [thread:$0]  %s1, 512, %s27, [#allocation7]
    $region9: #{tpu_custom_call.1} parent=1 // pred_fallthru
      _
    // Predicated region
    $region10: #{tpu_custom_call.1} parent=1 // pred_check
      _
    $region11: #{tpu_custom_call.1} parent=1 // pred_check_branch
      %31 = sbr.rel (0) target = $region13
    $region12: #{tpu_custom_call.1} parent=1 // pred_region
      %32 = dma.done [#allocation4], 512
    $region13: #{tpu_custom_call.1} parent=1 // pred_fallthru
      _
    // Predicated region
    $region14: #{tpu_custom_call.1} parent=1 // pred_check
      _
    $region15: #{tpu_custom_call.1} parent=1 // pred_check_branch
      %34 = sbr.rel (0) target = $region17
    $region16: #{tpu_custom_call.1} parent=1 // pred_region
      %35 = dma.done [#allocation7], 512
    $region17: #{tpu_custom_call.1} parent=1 // pred_fallthru
      _
    %p36 = scmp.eq.s32.totalorder 0, 0
    // Predicated region
    $region18: #{tpu_custom_call.1} parent=1 // pred_check
      %p37 = pneg %p36
    $region19: #{tpu_custom_call.1} parent=1 // pred_check_branch
      %39 = sbr.rel (%p37) target = $region21
    $region20: #{tpu_custom_call.1} parent=1 // pred_region
      %s40 = scalar_lea.smem [#allocation2], 0
      %41 = sst [smem:[%s40]] 0.0
    $region21: #{tpu_custom_call.1} parent=1 // pred_fallthru
      _
    %v42 = vld [vmem:[#allocation3] sm:$0xff]
    %v43 = vld [vmem:[#allocation3 + $0x8] sm:$0xff]
    %v44 = vld [vmem:[#allocation3 + $0x10] sm:$0xff]
    %v45 = vld [vmem:[#allocation3 + $0x18] sm:$0xff]
    %v46 = vld [vmem:[#allocation6] sm:$0xff]
    %v47 = vld [vmem:[#allocation6 + $0x8] sm:$0xff]
    %v48 = vld [vmem:[#allocation6 + $0x10] sm:$0xff]
    %v49 = vld [vmem:[#allocation6 + $0x18] sm:$0xff]
    %v50 = vsub.f32 %v42, %v46
    %v51 = vsub.f32 %v43, %v47
    %v52 = vsub.f32 %v44, %v48
    %v53 = vsub.f32 %v45, %v49
    %s54 = sld [smem:[#allocation2]]
    %v55 = vmul.f32 %v50, %v50
    %v56 = vmul.f32 %v51, %v51
    %v57 = vmul.f32 %v52, %v52
    %v58 = vmul.f32 %v53, %v53
    %v59 = vadd.f32 %v55, %v56
    %v60 = vadd.f32 %v59, %v57
    %v61 = vadd.f32 %v60, %v58
    %62 = vadd.xlane.f32.xlu0 %v61
    %v63 = vpop.xlane.xlu0 %62
    %v64 = vrot.slane %v63, 4
    %v65 = vadd.f32 %v63, %v64
    %v66 = vrot.slane %v65, 2
    %v67 = vadd.f32 %v65, %v66
    %v68 = vrot.slane %v67, 1
    %v69 = vadd.f32 %v67, %v68
    %s70 = vtos %v69
    %s71 = sadd.f32 %s54, %s70
    %s72 = scalar_lea.smem [#allocation2], 0
    %73 = sst [smem:[%s72]] %s71
    // Predicated region
    $region22: #{tpu_custom_call.1} parent=1 // pred_check
      %p74 = pneg %p36
    $region23: #{tpu_custom_call.1} parent=1 // pred_check_branch
      %76 = sbr.rel (%p74) target = $region25
    $region24: #{tpu_custom_call.1} parent=1 // pred_region
      %s77 = sld [smem:[#allocation2]]
      %s78 = smul.f32 %s77, 0.00048828125
      %s79 = scalar_lea.smem [#allocation8], 0
      %80 = sst [smem:[%s79]] %s78
    $region25: #{tpu_custom_call.1} parent=1 // pred_fallthru
      _
    // Predicated region
    $region26: #{tpu_custom_call.1} parent=1 // pred_check
      _
    $region27: #{tpu_custom_call.1} parent=1 // pred_check_branch
      %82 = sbr.rel (0) target = $region29
    $region28: #{tpu_custom_call.1} parent=1 // pred_region
      %s84 = ssub.s32 16, 16
      %85 = vsyncadd [#allocation5], %s84
      %88 = dma.smem_to_hbm [#allocation8], 16, %s2, [#allocation5]
    $region29: #{tpu_custom_call.1} parent=1 // pred_fallthru
      _
    // Predicated region
    $region30: #{tpu_custom_call.1} parent=1 // pred_check
      _
    $region31: #{tpu_custom_call.1} parent=1 // pred_check_branch
      %90 = sbr.rel (0) target = $region33
    $region32: #{tpu_custom_call.1} parent=1 // pred_region
      %91 = dma.done [#allocation5], 16
    $region33: #{tpu_custom_call.1} parent=1 // pred_fallthru
      _
    %92 = sfence
    %93 = vsyncpa [#allocation4], 1
    %94 = vsyncpa [#allocation7], 1
    %95 = vsyncpa [#allocation5], 1

</llo_original>
